<compile_context>
chip_gen: v6e
topology: v6e:2x2x1
jax: 0.10.0
libtpu: 0.0.40
codegen_flags: <defaults>
</compile_context>

<pallas_src>
import math

import jax
import jax.numpy as jnp
from jax import lax
from jax.experimental import pallas as pl
from jax.experimental.pallas import tpu as pltpu


def _round_up(x, m):
    return ((x + m - 1) // m) * m


def _sublane(dtype):
    # vreg sublane packing: 8 rows for 32-bit, 16 for 16-bit, 32 for 8-bit.
    return max(8, 32 // jnp.dtype(dtype).itemsize)


def _choose_tb(B):
    """Batch tile: multiple of 8 (or == B when tiny), <= 256, and giving >= 2
    grid steps when B allows so both v7x TensorCores get work."""
    if B <= 8:
        return B
    upper = min(256, ((B // 2) // 8) * 8)
    for cand in range(upper, 7, -8):          # largest mult-of-8 divisor <= B/2
        if B % cand == 0:
            return cand
    # No aligned divisor: ~half the batch rounded up to 8.  The last batch
    # tile is ragged; Pallas drops out-of-bounds writes and garbage rows never
    # mix with valid ones (seq-sum and matmul are row-independent).
    return min(256, _round_up(-(-B // 2), 8))


def _make_kernel(S_total, TS, mask_seq):
    """Grid: (batch tiles [parallel], sequence tiles [arbitrary reduction]).

    x_ref:   (TB, TS, D)  input tile
    w_ref:   (D, C_pad)   f32 weight with 1/S pre-folded  -- grid-resident
    b_ref:   (1, C_pad)   f32 bias                        -- grid-resident
    o_ref:   (TB, C_pad)  output tile (same block across reduction axis)
    acc_ref: (TB, D) f32  VMEM accumulator (running sequence sum)
    """

    def kernel(x_ref, w_ref, b_ref, o_ref, acc_ref):
        k = pl.program_id(1)

        @pl.when(k == 0)
        def _init():
            acc_ref[...] = jnp.zeros_like(acc_ref)

        xv = x_ref[...]
        if mask_seq:
            # Ragged last sequence tile: zero rows at/after S before summing.
            row = lax.broadcasted_iota(jnp.int32, (1, TS, 1), 1)
            xv = jnp.where(k * TS + row < S_total, xv, jnp.zeros_like(xv))
        # f32-accumulated sum over this sequence tile (no f32 copy of the tile).
        acc_ref[...] += jnp.sum(xv, axis=1, dtype=jnp.float32)

        @pl.when(k == pl.num_programs(1) - 1)
        def _finalize():
            # 1/S is already folded into w_ref, so this is mean(x) @ W^T + b.
            out = jnp.dot(acc_ref[...], w_ref[...],
                          preferred_element_type=jnp.float32)
            o_ref[...] = (out + b_ref[...]).astype(o_ref.dtype)

    return kernel


def classification_forward(x, weight, bias, *, x_tile_bytes=8 * 1024 * 1024):
    """x: (B, S, D), weight: (C, D) PyTorch layout, bias: (C,) -> (B, C)."""
    B, S, D = x.shape
    C = weight.shape[0]
    out_dtype = x.dtype
    itemsize = jnp.dtype(x.dtype).itemsize
    out_isz = jnp.dtype(out_dtype).itemsize
    sub = _sublane(x.dtype)

    # ---- lane-dense class dim: pad C to a multiple of 128 -----------------
    C_pad = _round_up(max(C, 1), 128)
    # Fold 1/S into the (small) weight once, in f32, before padding.
    # TODO(synk): for very large heads (D*C_pad*4 >> VMEM) tile C over a third
    # grid axis or cast the folded weight to bf16; resident f32 assumed here.
    w_t = weight.astype(jnp.float32).T * (1.0 / S)           # (D, C)
    w_t = jnp.pad(w_t, ((0, 0), (0, C_pad - C)))             # (D, C_pad)
    b2d = jnp.pad(bias.astype(jnp.float32).reshape(1, C),
                  ((0, 0), (0, C_pad - C)))                  # (1, C_pad)

    # ---- batch tile (grid axis 0, "parallel") ------------------------------
    TB = _choose_tb(B)
    # Keep the x budget real: if even a one-sublane-group sequence tile would
    # exceed it, shrink the batch tile instead of blowing VMEM.
    while TB > 8 and TB * D * itemsize * sub > x_tile_bytes:
        TB = max(8, ((TB // 2) // 8) * 8)

    # ---- sequence tile (grid axis 1, "arbitrary" reduction) ----------------
    budget_rows = max(sub, x_tile_bytes // max(1, TB * D * itemsize))
    if S <= budget_rows:
        TS = S                                   # one full-sequence tile
    else:
        budget_rows = max(sub, (budget_rows // sub) * sub)
        TS = budget_rows
        # Prefer a divisor of S (all tiles full, no in-kernel mask) as long as
        # it stays within ~2x of the budgeted tile size.
        for cand in range(budget_rows, max(sub, budget_rows // 2) - 1, -sub):
            if S % cand == 0:
                TS = cand
                break
    mask_seq = (S % TS) != 0

    grid = (pl.cdiv(B, TB), pl.cdiv(S, TS))

    # ---- explicit VMEM limit (double-buffered x, resident w/b, acc, out) ---
    d_pad = _round_up(D, 128)
    vmem_need = (
        2 * TB * _round_up(TS, sub) * d_pad * itemsize      # x (2 buffers)
        + 2 * _round_up(D, 8) * C_pad * 4                   # weight (2 buffers)
        + 2 * 8 * C_pad * 4                                 # bias (2 buffers)
        + _round_up(TB, 8) * d_pad * 4                      # f32 accumulator
        + 2 * _round_up(TB, 8) * C_pad * out_isz            # out (2 buffers)
    )
    vmem_limit = max(32 << 20, min(int(vmem_need * 1.4) + (2 << 20), 60 << 20))

    cost = pl.CostEstimate(
        flops=2 * B * D * C_pad + B * S * D,
        transcendentals=0,
        bytes_accessed=(B * S * D * itemsize
                        + D * C_pad * 4 + C_pad * 4
                        + B * C_pad * out_isz),
    )

    out = pl.pallas_call(
        _make_kernel(S, TS, mask_seq),
        out_shape=jax.ShapeDtypeStruct((B, C_pad), out_dtype),
        grid_spec=pltpu.PrefetchScalarGridSpec(
            num_scalar_prefetch=0,
            grid=grid,
            in_specs=[
                pl.BlockSpec((TB, TS, D), lambda i, k: (i, k, 0)),
                pl.BlockSpec((D, C_pad), lambda i, k: (0, 0)),   # resident
                pl.BlockSpec((1, C_pad), lambda i, k: (0, 0)),   # resident
            ],
            out_specs=pl.BlockSpec((TB, C_pad), lambda i, k: (i, 0)),
            scratch_shapes=[pltpu.VMEM((TB, D), jnp.float32)],
        ),
        compiler_params=pltpu.CompilerParams(
            dimension_semantics=("parallel", "arbitrary"),
            vmem_limit_bytes=vmem_limit),
        cost_estimate=cost,
    )(x, w_t, b2d)

    # Slice the class padding back off outside the kernel.
    return out[:, :C]


def init_params(key, d_model, num_classes):
    """Deterministic nn.Linear-style init."""
    kw, kb = jax.random.split(key)
    bound = 1.0 / math.sqrt(d_model)
    weight = jax.random.uniform(kw, (num_classes, d_model),
                                minval=-bound, maxval=bound, dtype=jnp.float32)
    bias = jax.random.uniform(kb, (num_classes,),
                              minval=-bound, maxval=bound, dtype=jnp.float32)
    return weight, bias


if __name__ == "__main__":
    B, S, D, C = 2, 8, 32, 10

    key = jax.random.PRNGKey(0)
    kx, kp = jax.random.split(key)
    x = jax.random.normal(kx, (B, S, D), dtype=jnp.float32)
    weight, bias = init_params(kp, D, C)

    out = classification_forward(x, weight, bias)
    out = jax.block_until_ready(out)

    # Pure-JAX reference check: mean over seq (dim=1) then Linear.
    ref = jnp.mean(x, axis=1) @ weight.T + bias
    assert out.shape == (B, C)
    assert jnp.allclose(out, ref, atol=1e-5, rtol=1e-5), "mismatch vs reference"

    print("KERNEL_OK")
</pallas_src>

<mosaic_0001>
module attributes {stable_mosaic.version = 11 : i64} {
  func.func @kernel(%arg0: i32, %arg1: i32, %arg2: memref<2x8x32xf32, #tpu.memory_space<vmem>>, %arg3: memref<32x128xf32, #tpu.memory_space<vmem>>, %arg4: memref<1x128xf32, #tpu.memory_space<vmem>>, %arg5: memref<2x128xf32, #tpu.memory_space<vmem>>, %arg6: memref<2x32xf32, #tpu.memory_space<vmem>>) attributes {dimension_semantics = [#tpu.dimension_semantics<parallel>, #tpu.dimension_semantics<arbitrary>], iteration_bounds = array<i64: 1, 1>, scalar_prefetch = 0 : i64, scratch_operands = 1 : i64, tpu.core_type = #tpu.core_type<tc>, window_params = [{transform_indices = @transform_0, window_bounds = array<i64: 2, 8, 32>}, {pipeline_mode = #tpu.pipeline_mode<synchronous>, transform_indices = @transform_1, window_bounds = array<i64: 32, 128>}, {pipeline_mode = #tpu.pipeline_mode<synchronous>, transform_indices = @transform_2, window_bounds = array<i64: 1, 128>}, {transform_indices = @transform_3, window_bounds = array<i64: 2, 128>}]} {
    %c0_i32 = arith.constant 0 : i32
    %0 = arith.cmpi eq, %arg1, %c0_i32 : i32
    %1 = arith.extui %0 : i1 to i32
    %c0_i32_0 = arith.constant 0 : i32
    %2 = arith.cmpi ne, %1, %c0_i32_0 : i32
    scf.if %2 {
      %cst_9 = arith.constant 0.000000e+00 : f32
      %11 = vector.broadcast %cst_9 : f32 to vector<2x32xf32>
      %c0_10 = arith.constant 0 : index
      %c0_11 = arith.constant 0 : index
      %12 = vector.load %arg6[%c0_10, %c0_11] : memref<2x32xf32, #tpu.memory_space<vmem>>, vector<2x32xf32>
      tpu.vector_store %arg6[%c0_10, %c0_11], %11 {strides = array<i32>} : memref<2x32xf32, #tpu.memory_space<vmem>>, vector<2x32xf32>,
    } else {
    }
    %c0 = arith.constant 0 : index
    %c0_1 = arith.constant 0 : index
    %c0_2 = arith.constant 0 : index
    %3 = vector.load %arg2[%c0, %c0_1, %c0_2] : memref<2x8x32xf32, #tpu.memory_space<vmem>>, vector<2x8x32xf32>
    %c0_3 = arith.constant 0 : index
    %c0_4 = arith.constant 0 : index
    %4 = vector.load %arg6[%c0_3, %c0_4] : memref<2x32xf32, #tpu.memory_space<vmem>>, vector<2x32xf32>
    %cst = arith.constant dense<0.000000e+00> : vector<2x32xf32>
    %5 = vector.multi_reduction <add>, %3, %cst [1] : vector<2x8x32xf32> to vector<2x32xf32>
    %6 = arith.addf %4, %5 : vector<2x32xf32>
    %c0_5 = arith.constant 0 : index
    %c0_6 = arith.constant 0 : index
    %7 = vector.load %arg6[%c0_5, %c0_6] : memref<2x32xf32, #tpu.memory_space<vmem>>, vector<2x32xf32>
    tpu.vector_store %arg6[%c0_5, %c0_6], %6 {strides = array<i32>} : memref<2x32xf32, #tpu.memory_space<vmem>>, vector<2x32xf32>,
    %c0_i32_7 = arith.constant 0 : i32
    %8 = arith.cmpi eq, %arg1, %c0_i32_7 : i32
    %9 = arith.extui %8 : i1 to i32
    %c0_i32_8 = arith.constant 0 : i32
    %10 = arith.cmpi ne, %9, %c0_i32_8 : i32
    scf.if %10 {
      %c0_9 = arith.constant 0 : index
      %c0_10 = arith.constant 0 : index
      %11 = vector.load %arg6[%c0_9, %c0_10] : memref<2x32xf32, #tpu.memory_space<vmem>>, vector<2x32xf32>
      %c0_11 = arith.constant 0 : index
      %c0_12 = arith.constant 0 : index
      %12 = vector.load %arg3[%c0_11, %c0_12] : memref<32x128xf32, #tpu.memory_space<vmem>>, vector<32x128xf32>
      %cst_13 = arith.constant dense<0.000000e+00> : vector<2x128xf32>
      %13 = tpu.matmul %11, %12, %cst_13 {dimension_numbers = #tpu.dot_dimension_numbers<[1], [0], [0], [1], [0, 0, 1, 1], [], []>} : vector<2x32xf32>, vector<32x128xf32>, vector<2x128xf32> -> vector<2x128xf32>
      %c0_14 = arith.constant 0 : index
      %c0_15 = arith.constant 0 : index
      %14 = vector.load %arg4[%c0_14, %c0_15] : memref<1x128xf32, #tpu.memory_space<vmem>>, vector<1x128xf32>
      %15 = vector.broadcast %14 : vector<1x128xf32> to vector<2x128xf32>
      %16 = arith.addf %13, %15 : vector<2x128xf32>
      %c0_16 = arith.constant 0 : index
      %c0_17 = arith.constant 0 : index
      %17 = vector.load %arg5[%c0_16, %c0_17] : memref<2x128xf32, #tpu.memory_space<vmem>>, vector<2x128xf32>
      tpu.vector_store %arg5[%c0_16, %c0_17], %16 {strides = array<i32>} : memref<2x128xf32, #tpu.memory_space<vmem>>, vector<2x128xf32>,
    } else {
    }
    return
  }
  func.func @transform_0(%arg0: i32, %arg1: i32) -> (i32, i32, i32) {
    %c0_i32 = arith.constant 0 : i32
    %c0_i32_0 = arith.constant 0 : i32
    return %arg0, %arg1, %c0_i32 : i32, i32, i32
  }
  func.func @transform_1(%arg0: i32, %arg1: i32) -> (i32, i32) {
    %c0_i32 = arith.constant 0 : i32
    %c0_i32_0 = arith.constant 0 : i32
    %c0_i32_1 = arith.constant 0 : i32
    return %c0_i32, %c0_i32_0 : i32, i32
  }
  func.func @transform_2(%arg0: i32, %arg1: i32) -> (i32, i32) {
    %c0_i32 = arith.constant 0 : i32
    %c0_i32_0 = arith.constant 0 : i32
    %c0_i32_1 = arith.constant 0 : i32
    return %c0_i32, %c0_i32_0 : i32, i32
  }
  func.func @transform_3(%arg0: i32, %arg1: i32) -> (i32, i32) {
    %c0_i32 = arith.constant 0 : i32
    %c0_i32_0 = arith.constant 0 : i32
    return %arg0, %c0_i32 : i32, i32
  }
}

</mosaic_0001>

<llo_original>
// kernel: tpu_custom_call.1
$region0: #{tpu_custom_call.1}
  #allocation0 [shape = 'u32[]', space=smem, size = 0x4, offset = 0x4, fixed_abs, tag = 'smem constant byte address 0x4 - core index']
  #allocation1 [shape = 'u32[144,128]{1,0:T(1,128)}', space=vmem, size = 0x12000, scoped, tag = 'internal scratch']
  #allocation2 [shape = 'f32[2,32]{1,0:T(2,128)}', space=vmem, size = 0x400, scoped, tag = 'scratch operand']
  %s0 = inlined_call_operand.hbm [shape: f32[2,8,32], index: 0, kind: input, shape index: {}]
  %s1 = inlined_call_operand.hbm [shape: f32[32,128], index: 1, kind: input, shape index: {}]
  %s2 = inlined_call_operand.vmem [shape: f32[1,128], index: 2, kind: input, shape index: {}]
  %s3 = inlined_call_operand.hbm [shape: f32[2,128], index: 3, kind: output, shape index: {}]
  %s4 = sld [smem:[#allocation0]]
  $region38: #{tpu_custom_call.1} parent=0
    _
  %s6 = ssub.s32 1, %s4
  %s7 = scalar_select 0, %s6, %s4
  $region1: #{tpu_custom_call.1} parent=0
    #allocation3 [shape = 'u8[8192]{0}', space=vmem, size = 0x2000, scoped, tag = 'input window, operand 0, single buffered']
    #allocation4 [shape = 's32[1]{0}', space=sflag, size = 0x4, scoped, tag = 'scoped memory for tpu_custom_call.1']
    #allocation5 [shape = 's32[1]{0}', space=sflag, size = 0x4, scoped, tag = 'scoped memory for tpu_custom_call.1']
    #allocation6 [shape = 'u8[16384]{0}', space=vmem, size = 0x4000, scoped, tag = 'input window, operand 1, single buffered']
    #allocation7 [shape = 's32[1]{0}', space=sflag, size = 0x4, scoped, tag = 'scoped memory for tpu_custom_call.1']
    #allocation8 [shape = 'u8[1024]{0}', space=vmem, size = 0x400, scoped, tag = 'output window, operand 0, single buffered']
    %8 = vsyncpa [#allocation4], 0
    %9 = vsyncpa [#allocation7], 0
    %10 = vsyncpa [#allocation5], 0
    // Predicated region
    $region2: #{tpu_custom_call.1} parent=1 // pred_check
      _
    $region3: #{tpu_custom_call.1} parent=1 // pred_check_branch
      %12 = sbr.rel (0) target = $region5
    $region4: #{tpu_custom_call.1} parent=1 // pred_region
      %s14 = ssub.s32 256, 256
      %15 = vsyncadd [#allocation4], %s14
      %s16 = sshll.u32 [#allocation3], 4
      %s17 = int_to_ptr.vmem [resolvable:$true] %s16
      %22 = dma.hbm_to_vmem [thread:$0]  %s0, 256, %s17, [#allocation4], 128, 128, 8
    $region5: #{tpu_custom_call.1} parent=1 // pred_fallthru
      _
    // Predicated region
    $region6: #{tpu_custom_call.1} parent=1 // pred_check
      _
    $region7: #{tpu_custom_call.1} parent=1 // pred_check_branch
      %24 = sbr.rel (0) target = $region9
    $region8: #{tpu_custom_call.1} parent=1 // pred_region
      %s26 = ssub.s32 512, 512
      %27 = vsyncadd [#allocation7], %s26
      %s28 = sshll.u32 [#allocation6], 4
      %s29 = int_to_ptr.vmem [resolvable:$true] %s28
      %34 = dma.hbm_to_vmem [thread:$0]  %s1, 512, %s29, [#allocation7], 128, 128, 8
    $region9: #{tpu_custom_call.1} parent=1 // pred_fallthru
      _
    // Predicated region
    $region10: #{tpu_custom_call.1} parent=1 // pred_check
      _
    $region11: #{tpu_custom_call.1} parent=1 // pred_check_branch
      %36 = sbr.rel (0) target = $region13
    $region12: #{tpu_custom_call.1} parent=1 // pred_region
      _
    $region13: #{tpu_custom_call.1} parent=1 // pred_fallthru
      _
    // Predicated region
    $region14: #{tpu_custom_call.1} parent=1 // pred_check
      _
    $region15: #{tpu_custom_call.1} parent=1 // pred_check_branch
      %38 = sbr.rel (0) target = $region17
    $region16: #{tpu_custom_call.1} parent=1 // pred_region
      %39 = dma.done [#allocation4], 256
    $region17: #{tpu_custom_call.1} parent=1 // pred_fallthru
      _
    // Predicated region
    $region18: #{tpu_custom_call.1} parent=1 // pred_check
      _
    $region19: #{tpu_custom_call.1} parent=1 // pred_check_branch
      %41 = sbr.rel (0) target = $region21
    $region20: #{tpu_custom_call.1} parent=1 // pred_region
      %42 = dma.done [#allocation7], 512
    $region21: #{tpu_custom_call.1} parent=1 // pred_fallthru
      _
    %p43 = scmp.eq.s32.totalorder 0, 0
    // Predicated region
    $region22: #{tpu_custom_call.1} parent=1 // pred_check
      %p44 = pneg %p43
    $region23: #{tpu_custom_call.1} parent=1 // pred_check_branch
      %46 = sbr.rel (%p44) target = $region25
    $region24: #{tpu_custom_call.1} parent=1 // pred_region
      %vm47 = vcmask 254976
      %48 = vst.msk [vmem:[#allocation2] sm:$0x3] %vm47, 0.0
    $region25: #{tpu_custom_call.1} parent=1 // pred_fallthru
      _
    %v49 = vld [vmem:[#allocation3] sm:$0xff]
    %v50 = vld [vmem:[#allocation3 + $0x8] sm:$0xff]
    %v51 = vld [vmem:[#allocation2] sm:$0x3]
    %vm52 = vcmask 261120
    %v53 = vsel %vm52, %v49, 0.0
    %v54 = vrot.slane %v53, 4
    %v55 = vadd.f32 %v53, %v54
    %v56 = vrot.slane %v55, 2
    %v57 = vadd.f32 %v55, %v56
    %v58 = vrot.slane %v57, 1
    %v59 = vadd.f32 %v57, %v58
    %v60 = vsel %vm52, %v50, 0.0
    %v61 = vrot.slane %v60, 4
    %v62 = vadd.f32 %v60, %v61
    %v63 = vrot.slane %v62, 2
    %v64 = vadd.f32 %v62, %v63
    %v65 = vrot.slane %v64, 1
    %v66 = vadd.f32 %v64, %v65
    %vm69 = vcmask 1041409
    %v70 = vsel %vm69, %v66, %v59
    %v72 = vadd.f32 %v51, %v70
    %vm73 = vcmask 254976
    %74 = vst.msk [vmem:[#allocation2] sm:$0x3] %vm73, %v72
    // Predicated region
    $region26: #{tpu_custom_call.1} parent=1 // pred_check
      %p75 = pneg %p43
    $region27: #{tpu_custom_call.1} parent=1 // pred_check_branch
      %77 = sbr.rel (%p75) target = $region29
    $region28: #{tpu_custom_call.1} parent=1 // pred_region
      %v78 = vld [vmem:[#allocation2] sm:$0x3]
      %v79 = vld [vmem:[#allocation6] sm:$0xff]
      %v80 = vld [vmem:[#allocation6 + $0x8] sm:$0xff]
      %v81 = vld [vmem:[#allocation6 + $0x10] sm:$0xff]
      %v82 = vld [vmem:[#allocation6 + $0x18] sm:$0xff]
      %v83 = vld [vmem:[%s2] sm:$0x1]
      %v85 = vlaneseq
      %v86 = vshrl.u32 %v85, 7
      %v87 = vsub.s32 0, %v86
      %v88 = vrot.slane %v83, %v87
      %v91 = vsel %vm52, %v78, 0
      %93 = vmatprep.subr.mxu0 0.0
      %94 = vmatpush1.msra.mxu0 0.0
      %95 = vmatprep.subr.mxu0 0.0
      %96 = vmatpush1.msra.mxu0 0.0
      %97 = vmatprep.subr.mxu0 0.0
      %98 = vmatpush1.msra.mxu0 0.0
      %99 = vmatprep.subr.mxu0 0.0
      %100 = vmatpush1.msra.mxu0 0.0
      %101 = vmatprep.subr.mxu0 0.0
      %102 = vmatpush1.msra.mxu0 0.0
      %103 = vmatprep.subr.mxu0 0.0
      %104 = vmatpush1.msra.mxu0 0.0
      %105 = vmatprep.subr.mxu0 0.0
      %106 = vmatpush1.msra.mxu0 0.0
      %107 = vmatprep.subr.mxu0 0.0
      %108 = vmatpush1.msra.mxu0 0.0
      %109 = vmatprep.subr.mxu0 0.0
      %110 = vmatpush1.msra.mxu0 0.0
      %111 = vmatprep.subr.mxu0 0.0
      %112 = vmatpush1.msra.mxu0 0.0
      %113 = vmatprep.subr.mxu0 0.0
      %114 = vmatpush1.msra.mxu0 0.0
      %115 = vmatprep.subr.mxu0 0.0
      %116 = vmatpush1.msra.mxu0 0.0
      %117 = vmatprep.subr.mxu0 0.0
      %118 = vmatpush1.msra.mxu0 %v82
      %119 = vmatprep.subr.mxu0 0.0
      %120 = vmatpush1.msra.mxu0 %v81
      %121 = vmatprep.subr.mxu0 0.0
      %122 = vmatpush1.msra.mxu0 %v80
      %123 = vmatprep.subr.mxu0 0.0
      %124 = vmatpush1.msra.mxu0 %v79
      %125 = vmatprep.subr.mxu0 0.0
      %126 = vmatpush2.msra.mxu0 0.0
      %127 = vmatprep.subr.mxu0 0.0
      %128 = vmatpush2.msra.mxu0 0.0
      %129 = vmatprep.subr.mxu0 0.0
      %130 = vmatpush2.msra.mxu0 0.0
      %131 = vmatprep.subr.mxu0 0.0
      %132 = vmatpush2.msra.mxu0 0.0
      %133 = vmatprep.subr.mxu0 0.0
      %134 = vmatpush2.msra.mxu0 0.0
      %135 = vmatprep.subr.mxu0 0.0
      %136 = vmatpush2.msra.mxu0 0.0
      %137 = vmatprep.subr.mxu0 0.0
      %138 = vmatpush2.msra.mxu0 0.0
      %139 = vmatprep.subr.mxu0 0.0
      %140 = vmatpush2.msra.mxu0 0.0
      %141 = vmatprep.subr.mxu0 0.0
      %142 = vmatpush2.msra.mxu0 0.0
      %143 = vmatprep.subr.mxu0 0.0
      %144 = vmatpush2.msra.mxu0 0.0
      %145 = vmatprep.subr.mxu0 0.0
      %146 = vmatpush2.msra.mxu0 0.0
      %147 = vmatprep.subr.mxu0 0.0
      %148 = vmatpush2.msra.mxu0 0.0
      %149 = vmatprep.subr.mxu0 0.0
      %150 = vmatpush2.msra.mxu0 0.0
      %151 = vmatprep.subr.mxu0 0.0
      %152 = vmatpush2.msra.mxu0 0.0
      %153 = vmatprep.subr.mxu0 0.0
      %154 = vmatpush2.msra.mxu0 0.0
      %155 = vmatprep.subr.mxu0 0.0
      %156 = vmatpush2.msra.mxu0 0.0
      %157 = vmatprep.mubr.f32.mxu0 0.0
      %158 = vmatmul.mubr.f32.gmra.mxu0 %v91
      %v159 = vpop.f32.mrf.mxu0
      %v160 = vadd.f32 %v88, %v159
      %v161 = vpop.f32.mrf.mxu0
      %162 = vdwg.mxu0
      %163 = vst [vmem:[#allocation8] sm:$0x3] %v160
    $region29: #{tpu_custom_call.1} parent=1 // pred_fallthru
      _
    // Predicated region
    $region30: #{tpu_custom_call.1} parent=1 // pred_check
      _
    $region31: #{tpu_custom_call.1} parent=1 // pred_check_branch
      %165 = sbr.rel (0) target = $region33
    $region32: #{tpu_custom_call.1} parent=1 // pred_region
      %s167 = ssub.s32 32, 32
      %168 = vsyncadd [#allocation5], %s167
      %s170 = sshll.u32 [#allocation8], 4
      %s171 = int_to_ptr.vmem [resolvable:$true] %s170
      %173 = dma.vmem_to_hbm [thread:$0]  %s171, 32, %s3, [#allocation5]
    $region33: #{tpu_custom_call.1} parent=1 // pred_fallthru
      _
    // Predicated region
    $region34: #{tpu_custom_call.1} parent=1 // pred_check
      _
    $region35: #{tpu_custom_call.1} parent=1 // pred_check_branch
      %175 = sbr.rel (0) target = $region37
    $region36: #{tpu_custom_call.1} parent=1 // pred_region
      %176 = dma.done [#allocation5], 32
    $region37: #{tpu_custom_call.1} parent=1 // pred_fallthru
      _
    %177 = vsyncpa [#allocation4], 1
    %178 = vsyncpa [#allocation7], 1
    %179 = vsyncpa [#allocation5], 1

</llo_original>
